<compile_context>
chip_gen: v5e
topology: v5e:2x2
jax: 0.10.0
libtpu: 0.0.40
codegen_flags: <defaults>
</compile_context>

<pallas_src>
import functools

import jax
import jax.numpy as jnp
from jax import lax
from jax.experimental import pallas as pl
from jax.experimental.pallas import tpu as pltpu


def _round_up(x, m):
    return (x + m - 1) // m * m


def _pad_to(x, shape):
    pads = [(0, t - s) for s, t in zip(x.shape, shape)]
    if any(p[1] for p in pads):
        return jnp.pad(x, pads)
    return x


def _choose_tile_q(lq_p, lk_p, d, dv_p, budget_bytes=32 * 1024 * 1024):
    """Pick a query-tile size whose double-buffered working set fits the budget."""
    f32 = 4
    # K and V blocks (full Lk), double buffered.
    kv_bytes = 2 * lk_p * (d + dv_p) * f32
    # Per query-row: q/out/attn/log_attn blocks (double buffered) + softmax temps.
    per_row = f32 * (2 * (d + dv_p + 2 * lk_p) + 4 * lk_p)
    avail = max(budget_bytes - kv_bytes, 8 * per_row)
    tq = int(avail // per_row)
    tq = max(8, min(512, (tq // 8) * 8))
    return min(tq, lq_p)


def _sdpa_kernel(q_ref, k_ref, v_ref, out_ref, attn_ref, logattn_ref,
                 *, inv_temperature, valid_lk, padded_lk):
    # Refs are 2-D tiles (leading batch dim squeezed by the BlockSpec).
    q = q_ref[...] * inv_temperature            # fold 1/temperature into q (Lq*D work)
    k = k_ref[...]                              # (Lk_p, D)
    v = v_ref[...]                              # (Lk_p, Dv_p)

    # s = q @ k^T, contracting the last dim of both operands (no k.T relayout).
    s = lax.dot_general(
        q, k,
        dimension_numbers=(((1,), (1,)), ((), ())),
        preferred_element_type=jnp.float32,
    )                                           # (TQ, Lk_p), f32

    if valid_lk != padded_lk:
        # Mask padded key columns so they get zero probability.
        col = lax.broadcasted_iota(jnp.int32, s.shape, 1)
        s = jnp.where(col < valid_lk, s, jnp.float32(-1e30))

    # Numerically-stable softmax / log_softmax along the key axis (torch dim=2).
    m = jnp.max(s, axis=-1, keepdims=True)
    e = jnp.exp(s - m)
    denom = jnp.sum(e, axis=-1, keepdims=True)
    inv_denom = pl.reciprocal(denom, approx=True)     # EUP slot, ~free
    attn = e * inv_denom
    log_attn = (s - m) - jnp.log(denom)

    # output = attn @ v   (MXU, f32 accumulation)
    out = jnp.dot(attn.astype(v.dtype), v, preferred_element_type=jnp.float32)

    out_ref[...] = out.astype(out_ref.dtype)
    attn_ref[...] = attn.astype(attn_ref.dtype)
    logattn_ref[...] = log_attn.astype(logattn_ref.dtype)


def scaled_dot_product_attention(q, k, v, temperature):
    """q: (B, Lq, D), k: (B, Lk, D), v: (B, Lk, Dv) -> (output, attn, log_attn)."""
    B, Lq, D = q.shape
    _, Lk, _ = k.shape
    Dv = v.shape[-1]

    # Lane-dense padding of the output last dims (only worth it when the dim is large;
    # tiny dims already fit one masked vreg store and padding would inflate writeback).
    Lk_p = _round_up(Lk, 128) if (Lk > 128 and Lk % 128 != 0) else Lk
    Dv_p = _round_up(Dv, 128) if (Dv > 128 and Dv % 128 != 0) else Dv

    # Query tiling.
    Lq_p = _round_up(Lq, 8)
    tq = _choose_tile_q(Lq_p, Lk_p, D, Dv_p)
    Lq_p = _round_up(Lq_p, tq)
    n_q_tiles = Lq_p // tq

    qp = _pad_to(q, (B, Lq_p, D))
    kp = _pad_to(k, (B, Lk_p, D))
    vp = _pad_to(v, (B, Lk_p, Dv_p))

    kernel = functools.partial(
        _sdpa_kernel,
        inv_temperature=1.0 / float(temperature),
        valid_lk=Lk,
        padded_lk=Lk_p,
    )

    out_shapes = (
        jax.ShapeDtypeStruct((B, Lq_p, Dv_p), q.dtype),      # output
        jax.ShapeDtypeStruct((B, Lq_p, Lk_p), jnp.float32),  # attn
        jax.ShapeDtypeStruct((B, Lq_p, Lk_p), jnp.float32),  # log_attn
    )

    output, attn, log_attn = pl.pallas_call(
        kernel,
        out_shape=out_shapes,
        grid_spec=pltpu.PrefetchScalarGridSpec(
            num_scalar_prefetch=0,
            grid=(B, n_q_tiles),
            in_specs=[
                pl.BlockSpec((None, tq, D), lambda b, i: (b, i, 0)),       # q tile
                pl.BlockSpec((None, Lk_p, D), lambda b, i: (b, 0, 0)),     # k (full Lk)
                pl.BlockSpec((None, Lk_p, Dv_p), lambda b, i: (b, 0, 0)),  # v (full Lk)
            ],
            out_specs=[
                pl.BlockSpec((None, tq, Dv_p), lambda b, i: (b, i, 0)),
                pl.BlockSpec((None, tq, Lk_p), lambda b, i: (b, i, 0)),
                pl.BlockSpec((None, tq, Lk_p), lambda b, i: (b, i, 0)),
            ],
        ),
        compiler_params=pltpu.CompilerParams(
            dimension_semantics=("parallel", "parallel"),
            vmem_limit_bytes=48 * 1024 * 1024,
        ),
    )(qp, kp, vp)

    # Strip padding back to the caller's shapes.
    output = output[:, :Lq, :Dv]
    attn = attn[:, :Lq, :Lk]
    log_attn = log_attn[:, :Lq, :Lk]
    return output, attn, log_attn


if __name__ == "__main__":
    # Small shapes consistent with the module's bmm semantics.
    B, Lq, Lk, D, Dv = 2, 8, 8, 32, 32
    temperature = float(D) ** 0.5

    key = jax.random.PRNGKey(0)
    kq, kk, kv = jax.random.split(key, 3)
    q = jax.random.normal(kq, (B, Lq, D), dtype=jnp.float32)
    k = jax.random.normal(kk, (B, Lk, D), dtype=jnp.float32)
    v = jax.random.normal(kv, (B, Lk, Dv), dtype=jnp.float32)

    output, attn, log_attn = scaled_dot_product_attention(q, k, v, temperature)
    jax.block_until_ready((output, attn, log_attn))

    # Pure-JAX reference check.
    s_ref = jnp.einsum("bqd,bkd->bqk", q, k) / temperature
    attn_ref = jax.nn.softmax(s_ref, axis=2)
    log_attn_ref = jax.nn.log_softmax(s_ref, axis=2)
    out_ref = jnp.einsum("bqk,bkd->bqd", attn_ref, v)

    assert output.shape == (B, Lq, Dv)
    assert attn.shape == (B, Lq, Lk)
    assert log_attn.shape == (B, Lq, Lk)

    # attn/output use the approximate EUP reciprocal (~1e-3 relative) -> looser tolerance.
    assert jnp.allclose(attn, attn_ref, atol=1e-3, rtol=1e-2), "attn mismatch"
    assert jnp.allclose(output, out_ref, atol=1e-3, rtol=1e-2), "output mismatch"
    # log_attn uses the exact log(denom) path -> tight tolerance.
    assert jnp.allclose(log_attn, log_attn_ref, atol=1e-5, rtol=1e-5), "log_attn mismatch"

    print("KERNEL_OK")
</pallas_src>

<mosaic_0001>
module attributes {stable_mosaic.version = 11 : i64} {
  func.func @_sdpa_kernel(%arg0: i32, %arg1: i32, %arg2: memref<1x8x32xf32, #tpu.memory_space<vmem>>, %arg3: memref<1x8x32xf32, #tpu.memory_space<vmem>>, %arg4: memref<1x8x32xf32, #tpu.memory_space<vmem>>, %arg5: memref<1x8x32xf32, #tpu.memory_space<vmem>>, %arg6: memref<1x8x8xf32, #tpu.memory_space<vmem>>, %arg7: memref<1x8x8xf32, #tpu.memory_space<vmem>>) attributes {dimension_semantics = [#tpu.dimension_semantics<parallel>, #tpu.dimension_semantics<parallel>], iteration_bounds = array<i64: 2, 1>, scalar_prefetch = 0 : i64, scratch_operands = 0 : i64, tpu.core_type = #tpu.core_type<tc>, window_params = [{transform_indices = @transform_0, window_bounds = array<i64: 1, 8, 32>}, {transform_indices = @transform_1, window_bounds = array<i64: 1, 8, 32>}, {transform_indices = @transform_2, window_bounds = array<i64: 1, 8, 32>}, {transform_indices = @transform_3, window_bounds = array<i64: 1, 8, 32>}, {transform_indices = @transform_4, window_bounds = array<i64: 1, 8, 8>}, {transform_indices = @transform_5, window_bounds = array<i64: 1, 8, 8>}]} {
    %c0 = arith.constant 0 : index
    %c0_0 = arith.constant 0 : index
    %c0_1 = arith.constant 0 : index
    %0 = vector.load %arg2[%c0, %c0_0, %c0_1] : memref<1x8x32xf32, #tpu.memory_space<vmem>>, vector<1x8x32xf32>
    %1 = vector.shape_cast %0 : vector<1x8x32xf32> to vector<8x32xf32>
    %cst = arith.constant 0.176776692 : f32
    %2 = vector.broadcast %cst : f32 to vector<8x32xf32>
    %3 = arith.mulf %1, %2 : vector<8x32xf32>
    %c0_2 = arith.constant 0 : index
    %c0_3 = arith.constant 0 : index
    %c0_4 = arith.constant 0 : index
    %4 = vector.load %arg3[%c0_2, %c0_3, %c0_4] : memref<1x8x32xf32, #tpu.memory_space<vmem>>, vector<1x8x32xf32>
    %5 = vector.shape_cast %4 : vector<1x8x32xf32> to vector<8x32xf32>
    %c0_5 = arith.constant 0 : index
    %c0_6 = arith.constant 0 : index
    %c0_7 = arith.constant 0 : index
    %6 = vector.load %arg4[%c0_5, %c0_6, %c0_7] : memref<1x8x32xf32, #tpu.memory_space<vmem>>, vector<1x8x32xf32>
    %7 = vector.shape_cast %6 : vector<1x8x32xf32> to vector<8x32xf32>
    %cst_8 = arith.constant dense<0.000000e+00> : vector<8x8xf32>
    %8 = tpu.matmul %3, %5, %cst_8 {dimension_numbers = #tpu.dot_dimension_numbers<[1], [1], [0], [0], [0, 0, 1, 0], [], []>} : vector<8x32xf32>, vector<8x32xf32>, vector<8x8xf32> -> vector<8x8xf32>
    %cst_9 = arith.constant dense<0xFF800000> : vector<8xf32>
    %9 = vector.multi_reduction <maximumf>, %8, %cst_9 [1] : vector<8x8xf32> to vector<8xf32>
    %10 = vector.shape_cast %9 : vector<8xf32> to vector<8x1xf32>
    %11 = vector.broadcast %10 : vector<8x1xf32> to vector<8x8xf32>
    %12 = arith.subf %8, %11 : vector<8x8xf32>
    %13 = math.exp %12 : vector<8x8xf32>
    %cst_10 = arith.constant dense<0.000000e+00> : vector<8xf32>
    %14 = vector.multi_reduction <add>, %13, %cst_10 [1] : vector<8x8xf32> to vector<8xf32>
    %15 = vector.shape_cast %14 : vector<8xf32> to vector<8x1xf32>
    %16 = tpu.reciprocal %15 {approx = true} : vector<8x1xf32> -> vector<8x1xf32>
    %17 = vector.broadcast %16 : vector<8x1xf32> to vector<8x8xf32>
    %18 = arith.mulf %13, %17 : vector<8x8xf32>
    %19 = vector.broadcast %10 : vector<8x1xf32> to vector<8x8xf32>
    %20 = arith.subf %8, %19 : vector<8x8xf32>
    %21 = math.log %15 : vector<8x1xf32>
    %22 = vector.broadcast %21 : vector<8x1xf32> to vector<8x8xf32>
    %23 = arith.subf %20, %22 : vector<8x8xf32>
    %cst_11 = arith.constant dense<0.000000e+00> : vector<8x32xf32>
    %24 = tpu.matmul %18, %7, %cst_11 {dimension_numbers = #tpu.dot_dimension_numbers<[1], [0], [0], [1], [0, 0, 1, 1], [], []>} : vector<8x8xf32>, vector<8x32xf32>, vector<8x32xf32> -> vector<8x32xf32>
    %c0_12 = arith.constant 0 : index
    %c0_13 = arith.constant 0 : index
    %c0_14 = arith.constant 0 : index
    %25 = vector.load %arg5[%c0_12, %c0_13, %c0_14] : memref<1x8x32xf32, #tpu.memory_space<vmem>>, vector<1x8x32xf32>
    %26 = vector.shape_cast %25 : vector<1x8x32xf32> to vector<8x32xf32>
    %27 = vector.shape_cast %24 : vector<8x32xf32> to vector<1x8x32xf32>
    tpu.vector_store %arg5[%c0_12, %c0_13, %c0_14], %27 {strides = array<i32>} : memref<1x8x32xf32, #tpu.memory_space<vmem>>, vector<1x8x32xf32>,
    %c0_15 = arith.constant 0 : index
    %c0_16 = arith.constant 0 : index
    %c0_17 = arith.constant 0 : index
    %28 = vector.load %arg6[%c0_15, %c0_16, %c0_17] : memref<1x8x8xf32, #tpu.memory_space<vmem>>, vector<1x8x8xf32>
    %29 = vector.shape_cast %28 : vector<1x8x8xf32> to vector<8x8xf32>
    %30 = vector.shape_cast %18 : vector<8x8xf32> to vector<1x8x8xf32>
    tpu.vector_store %arg6[%c0_15, %c0_16, %c0_17], %30 {strides = array<i32>} : memref<1x8x8xf32, #tpu.memory_space<vmem>>, vector<1x8x8xf32>,
    %c0_18 = arith.constant 0 : index
    %c0_19 = arith.constant 0 : index
    %c0_20 = arith.constant 0 : index
    %31 = vector.load %arg7[%c0_18, %c0_19, %c0_20] : memref<1x8x8xf32, #tpu.memory_space<vmem>>, vector<1x8x8xf32>
    %32 = vector.shape_cast %31 : vector<1x8x8xf32> to vector<8x8xf32>
    %33 = vector.shape_cast %23 : vector<8x8xf32> to vector<1x8x8xf32>
    tpu.vector_store %arg7[%c0_18, %c0_19, %c0_20], %33 {strides = array<i32>} : memref<1x8x8xf32, #tpu.memory_space<vmem>>, vector<1x8x8xf32>,
    return
  }
  func.func @transform_0(%arg0: i32, %arg1: i32) -> (i32, i32, i32) {
    %c0_i32 = arith.constant 0 : i32
    %c0_i32_0 = arith.constant 0 : i32
    return %arg0, %arg1, %c0_i32 : i32, i32, i32
  }
  func.func @transform_1(%arg0: i32, %arg1: i32) -> (i32, i32, i32) {
    %c0_i32 = arith.constant 0 : i32
    %c0_i32_0 = arith.constant 0 : i32
    %c0_i32_1 = arith.constant 0 : i32
    return %arg0, %c0_i32, %c0_i32_0 : i32, i32, i32
  }
  func.func @transform_2(%arg0: i32, %arg1: i32) -> (i32, i32, i32) {
    %c0_i32 = arith.constant 0 : i32
    %c0_i32_0 = arith.constant 0 : i32
    %c0_i32_1 = arith.constant 0 : i32
    return %arg0, %c0_i32, %c0_i32_0 : i32, i32, i32
  }
  func.func @transform_3(%arg0: i32, %arg1: i32) -> (i32, i32, i32) {
    %c0_i32 = arith.constant 0 : i32
    %c0_i32_0 = arith.constant 0 : i32
    return %arg0, %arg1, %c0_i32 : i32, i32, i32
  }
  func.func @transform_4(%arg0: i32, %arg1: i32) -> (i32, i32, i32) {
    %c0_i32 = arith.constant 0 : i32
    %c0_i32_0 = arith.constant 0 : i32
    return %arg0, %arg1, %c0_i32 : i32, i32, i32
  }
  func.func @transform_5(%arg0: i32, %arg1: i32) -> (i32, i32, i32) {
    %c0_i32 = arith.constant 0 : i32
    %c0_i32_0 = arith.constant 0 : i32
    return %arg0, %arg1, %c0_i32 : i32, i32, i32
  }
}

</mosaic_0001>

<llo_original>
// kernel: tpu_custom_call.1
$region0: #{tpu_custom_call.1}
  #allocation0 [shape = 'u32[]', space=smem, size = 0x4, offset = 0x4, fixed_abs, tag = 'smem constant byte address 0x4 - core index']
  #allocation1 [shape = 'u32[72,128]{1,0:T(1,128)}', space=vmem, size = 0x9000, scoped, tag = 'internal scratch']
  %s0 = inlined_call_operand.hbm [shape: f32[2,8,32], index: 0, kind: input, shape index: {}]
  %s1 = inlined_call_operand.hbm [shape: f32[2,8,32], index: 1, kind: input, shape index: {}]
  %s2 = inlined_call_operand.hbm [shape: f32[2,8,32], index: 2, kind: input, shape index: {}]
  %s3 = inlined_call_operand.hbm [shape: f32[2,8,32], index: 3, kind: output, shape index: {0}]
  %s4 = inlined_call_operand.hbm [shape: f32[2,8,8], index: 4, kind: output, shape index: {1}]
  %s5 = inlined_call_operand.hbm [shape: f32[2,8,8], index: 5, kind: output, shape index: {2}]
  %6 = xla_tuple %s3, %s4, %s5
  %s7 = sld [smem:[#allocation0]]
  $region73: #{tpu_custom_call.1} parent=0
    _
  %s9 = ssub.s32 1, %s7
  %s10 = scalar_select 0, %s9, %s7
  $region1: #{tpu_custom_call.1} parent=0
    #allocation2 [shape = 'u8[8192]{0}', space=vmem, size = 0x2000, scoped, tag = 'input window, operand 0']
    #allocation3 [shape = 's32[2]{0}', space=sflag, size = 0x8, scoped, tag = 'scoped memory for tpu_custom_call.1']
    #allocation4 [shape = 's32[2]{0}', space=sflag, size = 0x8, scoped, tag = 'scoped memory for tpu_custom_call.1']
    #allocation5 [shape = 'u8[8192]{0}', space=vmem, size = 0x2000, scoped, tag = 'input window, operand 1']
    #allocation6 [shape = 's32[2]{0}', space=sflag, size = 0x8, scoped, tag = 'scoped memory for tpu_custom_call.1']
    #allocation7 [shape = 'u8[8192]{0}', space=vmem, size = 0x2000, scoped, tag = 'input window, operand 2']
    #allocation8 [shape = 'u8[8192]{0}', space=vmem, size = 0x2000, scoped, tag = 'output window, operand 0']
    #allocation9 [shape = 'u8[8192]{0}', space=vmem, size = 0x2000, scoped, tag = 'output window, operand 1']
    #allocation10 [shape = 's32[2]{0}', space=sflag, size = 0x8, scoped, tag = 'scoped memory for tpu_custom_call.1']
    #allocation11 [shape = 'u8[8192]{0}', space=vmem, size = 0x2000, scoped, tag = 'output window, operand 2']
    %11 = vsyncpa [#allocation3], 0
    %s12 = scalar_lea.sflag [#allocation3], 1
    %13 = vsyncpa %s12, 0
    %14 = vsyncpa [#allocation6], 0
    %s15 = scalar_lea.sflag [#allocation6], 1
    %16 = vsyncpa %s15, 0
    %17 = vsyncpa [#allocation4], 0
    %s18 = scalar_lea.sflag [#allocation4], 1
    %19 = vsyncpa %s18, 0
    %20 = vsyncpa [#allocation10], 0
    %s21 = scalar_lea.sflag [#allocation10], 1
    %22 = vsyncpa %s21, 0
    loop: start=0, step=1, limit=4
    $region2: #{tpu_custom_call.1} parent=1 // loop_pre_header
      _
    $region3: #{tpu_custom_call.1} parent=1 // loop_header
      %s24 = sphi 0, %s28
      %p25 = scmp.ge.s32.totalorder %s24, 4
      %s31 = sphi 0, %s43
      %s32 = sphi 0, %s39
      %s33 = sphi 0, %s31
      %s34 = sphi 0, %s32
      %s35 = sphi 0, %s33
      %s36 = sphi 0, %s34
      %s48 = sphi 0, %s50
      %s51 = sphi 0, %s48
      %s52 = sphi 0, %s51
      %s68 = sphi 0, %s52
      %s74 = sphi 0, %s76
      %s77 = sphi 0, %s74
      %s78 = sphi 0, %s77
      %s94 = sphi 0, %s78
      %s100 = sphi 0, %s102
      %s103 = sphi 0, %s100
      %s104 = sphi 0, %s103
      %s120 = sphi 0, %s104
      %s128 = sphi 0, %s130
      %s131 = sphi 0, %s128
      %s132 = sphi 0, %s131
      %s148 = sphi 0, %s132
      %s156 = sphi 0, %s158
      %s159 = sphi 0, %s156
      %s160 = sphi 0, %s159
      %s176 = sphi 0, %s160
      %s184 = sphi 0, %s186
      %s187 = sphi 0, %s184
      %s188 = sphi 0, %s187
      %s204 = sphi 0, %s188
    $region4: #{tpu_custom_call.1} parent=1 // loop_header_branch
      %27 = sbr.rel (%p25) target = $region8
    $region5: #{tpu_custom_call.1} parent=1 // loop_body
      %s29 = ssub.s32 %s24, 1
      %s30 = ssub.s32 %s24, 2
      %s37 = sadd.s32 1, %s32
      %p38 = scmp.ge.s32.totalorder %s37, 1
      %s39 = scalar_select %p38, 0, %s37
      %s40 = sadd.s32 1, %s31
      %s41 = scalar_select %p38, %s40, %s31
      %p42 = scmp.ge.s32.totalorder %s41, 2
      %s43 = scalar_select %p42, 0, %s41
      %s44 = ssub.s32 %s31, %s43
      %s45 = ssub.s32 %s32, %s39
      %s46 = sor.u32 %s44, %s45
      %p47 = scmp.eq.s32.totalorder %s46, 0
      %s49 = sadd.s32 %s48, 1
      %s50 = scalar_select %p47, %s48, %s49
      %p53 = pneg %p47
      %p54 = scmp.eq.s32.totalorder %s24, 1
      %p55 = por %p53, %p54
      %p56 = scmp.ne.s32.totalorder %s48, %s51
      %p57 = scmp.eq.s32.totalorder %s24, 0
      %p58 = por %p56, %p57
      %p59 = scmp.ne.s32.totalorder %s48, %s51
      %p60 = scmp.eq.s32.totalorder %s29, 1
      %p61 = por %p59, %p60
      %p62 = scmp.ne.s32.totalorder %s51, %s52
      %p63 = scmp.eq.s32.totalorder %s29, 0
      %p64 = por %p62, %p63
      %p65 = scmp.ne.s32.totalorder %s51, %s52
      %p66 = scmp.eq.s32.totalorder %s30, 1
      %p67 = por %p65, %p66
      %p69 = scmp.ne.s32.totalorder %s52, %s68
      %p70 = scmp.eq.s32.totalorder %s30, 0
      %p71 = por %p69, %p70
      %s72 = ssub.s32 %s31, %s43
      %p73 = scmp.eq.s32.totalorder %s72, 0
      %s75 = sadd.s32 %s74, 1
      %s76 = scalar_select %p73, %s74, %s75
      %p79 = pneg %p73
      %p80 = scmp.eq.s32.totalorder %s24, 1
      %p81 = por %p79, %p80
      %p82 = scmp.ne.s32.totalorder %s74, %s77
      %p83 = scmp.eq.s32.totalorder %s24, 0
      %p84 = por %p82, %p83
      %p85 = scmp.ne.s32.totalorder %s74, %s77
      %p86 = scmp.eq.s32.totalorder %s29, 1
      %p87 = por %p85, %p86
      %p88 = scmp.ne.s32.totalorder %s77, %s78
      %p89 = scmp.eq.s32.totalorder %s29, 0
      %p90 = por %p88, %p89
      %p91 = scmp.ne.s32.totalorder %s77, %s78
      %p92 = scmp.eq.s32.totalorder %s30, 1
      %p93 = por %p91, %p92
      %p95 = scmp.ne.s32.totalorder %s78, %s94
      %p96 = scmp.eq.s32.totalorder %s30, 0
      %p97 = por %p95, %p96
      %s98 = ssub.s32 %s31, %s43
      %p99 = scmp.eq.s32.totalorder %s98, 0
      %s101 = sadd.s32 %s100, 1
      %s102 = scalar_select %p99, %s100, %s101
      %p105 = pneg %p99
      %p106 = scmp.eq.s32.totalorder %s24, 1
      %p107 = por %p105, %p106
      %p108 = scmp.ne.s32.totalorder %s100, %s103
      %p109 = scmp.eq.s32.totalorder %s24, 0
      %p110 = por %p108, %p109
      %p111 = scmp.ne.s32.totalorder %s100, %s103
      %p112 = scmp.eq.s32.totalorder %s29, 1
      %p113 = por %p111, %p112
      %p114 = scmp.ne.s32.totalorder %s103, %s104
      %p115 = scmp.eq.s32.totalorder %s29, 0
      %p116 = por %p114, %p115
      %p117 = scmp.ne.s32.totalorder %s103, %s104
      %p118 = scmp.eq.s32.totalorder %s30, 1
      %p119 = por %p117, %p118
      %p121 = scmp.ne.s32.totalorder %s104, %s120
      %p122 = scmp.eq.s32.totalorder %s30, 0
      %p123 = por %p121, %p122
      %s124 = ssub.s32 %s31, %s43
      %s125 = ssub.s32 %s32, %s39
      %s126 = sor.u32 %s124, %s125
      %p127 = scmp.eq.s32.totalorder %s126, 0
      %s129 = sadd.s32 %s128, 1
      %s130 = scalar_select %p127, %s128, %s129
      %p133 = pneg %p127
      %p134 = scmp.eq.s32.totalorder %s24, 1
      %p135 = por %p133, %p134
      %p136 = scmp.ne.s32.totalorder %s128, %s131
      %p137 = scmp.eq.s32.totalorder %s24, 0
      %p138 = por %p136, %p137
      %p139 = scmp.ne.s32.totalorder %s128, %s131
      %p140 = scmp.eq.s32.totalorder %s29, 1
      %p141 = por %p139, %p140
      %p142 = scmp.ne.s32.totalorder %s131, %s132
      %p143 = scmp.eq.s32.totalorder %s29, 0
      %p144 = por %p142, %p143
      %p145 = scmp.ne.s32.totalorder %s131, %s132
      %p146 = scmp.eq.s32.totalorder %s30, 1
      %p147 = por %p145, %p146
      %p149 = scmp.ne.s32.totalorder %s132, %s148
      %p150 = scmp.eq.s32.totalorder %s30, 0
      %p151 = por %p149, %p150
      %s152 = ssub.s32 %s31, %s43
      %s153 = ssub.s32 %s32, %s39
      %s154 = sor.u32 %s152, %s153
      %p155 = scmp.eq.s32.totalorder %s154, 0
      %s157 = sadd.s32 %s156, 1
      %s158 = scalar_select %p155, %s156, %s157
      %p161 = pneg %p155
      %p162 = scmp.eq.s32.totalorder %s24, 1
      %p163 = por %p161, %p162
      %p164 = scmp.ne.s32.totalorder %s156, %s159
      %p165 = scmp.eq.s32.totalorder %s24, 0
      %p166 = por %p164, %p165
      %p167 = scmp.ne.s32.totalorder %s156, %s159
      %p168 = scmp.eq.s32.totalorder %s29, 1
      %p169 = por %p167, %p168
      %p170 = scmp.ne.s32.totalorder %s159, %s160
      %p171 = scmp.eq.s32.totalorder %s29, 0
      %p172 = por %p170, %p171
      %p173 = scmp.ne.s32.totalorder %s159, %s160
      %p174 = scmp.eq.s32.totalorder %s30, 1
      %p175 = por %p173, %p174
      %p177 = scmp.ne.s32.totalorder %s160, %s176
      %p178 = scmp.eq.s32.totalorder %s30, 0
      %p179 = por %p177, %p178
      %s180 = ssub.s32 %s31, %s43
      %s181 = ssub.s32 %s32, %s39
      %s182 = sor.u32 %s180, %s181
      %p183 = scmp.eq.s32.totalorder %s182, 0
      %s185 = sadd.s32 %s184, 1
      %s186 = scalar_select %p183, %s184, %s185
      %p189 = pneg %p183
      %p190 = scmp.eq.s32.totalorder %s24, 1
      %p191 = por %p189, %p190
      %p192 = scmp.ne.s32.totalorder %s184, %s187
      %p193 = scmp.eq.s32.totalorder %s24, 0
      %p194 = por %p192, %p193
      %p195 = scmp.ne.s32.totalorder %s184, %s187
      %p196 = scmp.eq.s32.totalorder %s29, 1
      %p197 = por %p195, %p196
      %p198 = scmp.ne.s32.totalorder %s187, %s188
      %p199 = scmp.eq.s32.totalorder %s29, 0
      %p200 = por %p198, %p199
      %p201 = scmp.ne.s32.totalorder %s187, %s188
      %p202 = scmp.eq.s32.totalorder %s30, 1
      %p203 = por %p201, %p202
      %p205 = scmp.ne.s32.totalorder %s188, %s204
      %p206 = scmp.eq.s32.totalorder %s30, 0
      %p207 = por %p205, %p206
      %p208 = scmp.le.s32.totalorder 1, %s24
      %p209 = scmp.lt.s32.totalorder %s24, 3
      %p210 = pnand %p208, %p209
      %p211 = pneg %p210
      // Predicated region
      $region9: #{tpu_custom_call.1} parent=5 // pred_check
        _
      $region10: #{tpu_custom_call.1} parent=5 // pred_check_branch
        %213 = sbr.rel (%p210) target = $region12
      $region11: #{tpu_custom_call.1} parent=5 // pred_region
        %s214 = ssub.s32 %s24, 1
      $region12: #{tpu_custom_call.1} parent=5 // pred_fallthru
        _
      %p215 = scmp.lt.s32.totalorder %s24, 2
      // Predicated region
      $region13: #{tpu_custom_call.1} parent=5 // pred_check
        %p216 = pneg %p215
      $region14: #{tpu_custom_call.1} parent=5 // pred_check_branch
        %218 = sbr.rel (%p216) target = $region16
      $region15: #{tpu_custom_call.1} parent=5 // pred_region
        // Predicated region
        $region17: #{tpu_custom_call.1} parent=15 // pred_check
          %p219 = pneg %p58
        $region18: #{tpu_custom_call.1} parent=15 // pred_check_branch
          %221 = sbr.rel (%p219) target = $region20
        $region19: #{tpu_custom_call.1} parent=15 // pred_region
          %s222 = sand.u32 %s48, 1
          %s223 = scalar_lea.sflag [#allocation3], %s222
          %s224 = sand.u32 %s48, 1
          %s225 = smul.addr %s224, 8
          %s226 = scalar_lea.vmem [#allocation2], %s225
          %228 = vsyncadd %s223, 0
          %s229 = sadd.s32 %s32, %s31
          %s230 = smul.addr %s229, 8
          %s231 = scalar_lea.hbm %s0, %s230
          %s233 = sshll.u32 %s231, 4
          %s234 = int_to_ptr.hbm [resolvable:$true] %s233
          %s235 = sshll.u32 %s226, 4
          %s236 = int_to_ptr.vmem [resolvable:$true] %s235
          %238 = dma.hbm_to_vmem [thread:$0]  %s234, 128, %s236, %s223
        $region20: #{tpu_custom_call.1} parent=15 // pred_fallthru
          _
        // Predicated region
        $region21: #{tpu_custom_call.1} parent=15 // pred_check
          %p239 = pneg %p84
        $region22: #{tpu_custom_call.1} parent=15 // pred_check_branch
          %241 = sbr.rel (%p239) target = $region24
        $region23: #{tpu_custom_call.1} parent=15 // pred_region
          %s242 = sand.u32 %s24, 1
          %s243 = scalar_lea.sflag [#allocation6], %s242
          %s244 = sand.u32 %s74, 1
          %s245 = smul.addr %s244, 8
          %s246 = scalar_lea.vmem [#allocation5], %s245
          %248 = vsyncadd %s243, 0
          %s249 = smul.addr %s31, 8
          %s250 = scalar_lea.hbm %s1, %s249
          %s252 = sshll.u32 %s250, 4
          %s253 = int_to_ptr.hbm [resolvable:$true] %s252
          %s254 = sshll.u32 %s246, 4
          %s255 = int_to_ptr.vmem [resolvable:$true] %s254
          %257 = dma.hbm_to_vmem [thread:$0]  %s253, 128, %s255, %s243
        $region24: #{tpu_custom_call.1} parent=15 // pred_fallthru
          _
        // Predicated region
        $region25: #{tpu_custom_call.1} parent=15 // pred_check
          %p258 = pneg %p110
        $region26: #{tpu_custom_call.1} parent=15 // pred_check_branch
          %260 = sbr.rel (%p258) target = $region28
        $region27: #{tpu_custom_call.1} parent=15 // pred_region
          %s261 = sand.u32 %s24, 1
          %s262 = scalar_lea.sflag [#allocation6], %s261
          %s263 = sand.u32 %s100, 1
          %s264 = smul.addr %s263, 8
          %s265 = scalar_lea.vmem [#allocation7], %s264
          %267 = vsyncadd %s262, 0
          %s268 = smul.addr %s31, 8
          %s269 = scalar_lea.hbm %s2, %s268
          %s271 = sshll.u32 %s269, 4
          %s272 = int_to_ptr.hbm [resolvable:$true] %s271
          %s273 = sshll.u32 %s265, 4
          %s274 = int_to_ptr.vmem [resolvable:$true] %s273
          %276 = dma.hbm_to_vmem [thread:$0]  %s272, 128, %s274, %s262
        $region28: #{tpu_custom_call.1} parent=15 // pred_fallthru
          _
      $region16: #{tpu_custom_call.1} parent=5 // pred_fallthru
        _
      %p277 = scmp.le.s32.totalorder 1, %s24
      %p278 = scmp.lt.s32.totalorder %s24, 3
      %p279 = pnand %p277, %p278
      %p280 = pneg %p279
      // Predicated region
      $region29: #{tpu_custom_call.1} parent=5 // pred_check
        _
      $region30: #{tpu_custom_call.1} parent=5 // pred_check_branch
        %282 = sbr.rel (%p279) target = $region32
      $region31: #{tpu_custom_call.1} parent=5 // pred_region
        %s283 = ssub.s32 %s24, 1
        %s284 = sand.u32 %s51, 1
        %s285 = scalar_lea.sflag [#allocation3], %s284
        %s286 = sand.u32 %s51, 1
        %s287 = smul.addr %s286, 8
        %s288 = scalar_lea.vmem [#allocation2], %s287
        // Predicated region
        $region33: #{tpu_custom_call.1} parent=31 // pred_check
          %p289 = pneg %p64
        $region34: #{tpu_custom_call.1} parent=31 // pred_check_branch
          %291 = sbr.rel (%p289) target = $region36
        $region35: #{tpu_custom_call.1} parent=31 // pred_region
          %293 = dma.done %s285, 128
        $region36: #{tpu_custom_call.1} parent=31 // pred_fallthru
          _
        %s294 = sand.u32 %s29, 1
        %s295 = scalar_lea.sflag [#allocation6], %s294
        %s296 = sand.u32 %s77, 1
        %s297 = smul.addr %s296, 8
        %s298 = scalar_lea.vmem [#allocation5], %s297
        // Predicated region
        $region37: #{tpu_custom_call.1} parent=31 // pred_check
          %p299 = pneg %p90
        $region38: #{tpu_custom_call.1} parent=31 // pred_check_branch
          %301 = sbr.rel (%p299) target = $region40
        $region39: #{tpu_custom_call.1} parent=31 // pred_region
          %303 = dma.done %s295, 128
        $region40: #{tpu_custom_call.1} parent=31 // pred_fallthru
          _
        %s304 = sand.u32 %s29, 1
        %s305 = scalar_lea.sflag [#allocation6], %s304
        %s306 = sand.u32 %s103, 1
        %s307 = smul.addr %s306, 8
        %s308 = scalar_lea.vmem [#allocation7], %s307
        // Predicated region
        $region41: #{tpu_custom_call.1} parent=31 // pred_check
          %p309 = pneg %p116
        $region42: #{tpu_custom_call.1} parent=31 // pred_check_branch
          %311 = sbr.rel (%p309) target = $region44
        $region43: #{tpu_custom_call.1} parent=31 // pred_region
          %313 = dma.done %s305, 128
        $region44: #{tpu_custom_call.1} parent=31 // pred_fallthru
          _
        %s314 = sand.u32 %s51, 1
        %s315 = scalar_lea.sflag [#allocation3], %s314
        %s316 = sand.u32 %s51, 1
        %s317 = smul.addr %s316, 8
        %s318 = scalar_lea.vmem [#allocation2], %s317
        %p319 = pneg %p64
        %p320 = pneg %p61
        %s321 = sand.u32 %s29, 1
        %s322 = scalar_lea.sflag [#allocation6], %s321
        %s323 = sand.u32 %s77, 1
        %s324 = smul.addr %s323, 8
        %s325 = scalar_lea.vmem [#allocation5], %s324
        %p326 = pneg %p90
        %p327 = pneg %p87
        %s328 = sand.u32 %s29, 1
        %s329 = scalar_lea.sflag [#allocation6], %s328
        %s330 = sand.u32 %s103, 1
        %s331 = smul.addr %s330, 8
        %s332 = scalar_lea.vmem [#allocation7], %s331
        %p333 = pneg %p116
        %p334 = pneg %p113
        %p335 = pneg %p144
        %p336 = pneg %p141
        %s337 = sand.u32 %s131, 1
        %s338 = scalar_lea.sflag [#allocation4], %s337
        %s339 = sand.u32 %s131, 1
        %s340 = smul.addr %s339, 8
        %s341 = scalar_lea.vmem [#allocation8], %s340
        %p342 = pneg %p172
        %p343 = pneg %p169
        %s344 = sand.u32 %s29, 1
        %s345 = scalar_lea.sflag [#allocation10], %s344
        %s346 = sand.u32 %s159, 1
        %s347 = smul.addr %s346, 8
        %s348 = scalar_lea.vmem [#allocation9], %s347
        %p349 = pneg %p200
        %p350 = pneg %p197
        %s351 = sand.u32 %s29, 1
        %s352 = scalar_lea.sflag [#allocation10], %s351
        %s353 = sand.u32 %s187, 1
        %s354 = smul.addr %s353, 8
        %s355 = scalar_lea.vmem [#allocation11], %s354
        %v356 = vld [vmem:[%s288] sm:$0xff]
        %v357 = vmul.f32 %v356, 0.17677669
        %v358 = vld [vmem:[%s298] sm:$0xff]
        %v359 = vld [vmem:[%s308] sm:$0xff]
        %vm360 = vcmask 261120
        %v362 = vsel %vm360, %v357, 0
        %v365 = vsel %vm360, %v358, 0
        %367 = vmatpush.xpose.msra.mxu0 0.0
        %368 = vmatpush.xpose.msra.mxu0 0.0
        %369 = vmatpush.xpose.msra.mxu0 0.0
        %370 = vmatpush.xpose.msra.mxu0 0.0
        %371 = vmatpush.xpose.msra.mxu0 0.0
        %372 = vmatpush.xpose.msra.mxu0 0.0
        %373 = vmatpush.xpose.msra.mxu0 0.0
        %374 = vmatpush.xpose.msra.mxu0 0.0
        %375 = vmatpush.xpose.msra.mxu0 0.0
        %376 = vmatpush.xpose.msra.mxu0 0.0
        %377 = vmatpush.xpose.msra.mxu0 0.0
        %378 = vmatpush.xpose.msra.mxu0 0.0
        %379 = vmatpush.xpose.msra.mxu0 0.0
        %380 = vmatpush.xpose.msra.mxu0 0.0
        %381 = vmatpush.xpose.msra.mxu0 0.0
        %382 = vmatpush.xpose.msra.mxu0 %v365
        %383 = vmatmul.f32.gmra.mxu0 %v362
        %v384 = vpop.f32.mrf.mxu0
        %v385 = vadd.f32 0.0, %v384
        %386 = vdwg.mxu0
        %vm387 = vcmask 64512
        %v388 = vsel %vm387, %v385, -inf
        %389 = vmax.xlane.f32.xlu0 %v388
        %v390 = vpop.xlane.xlu0 %389
        %v391 = vsub.f32 %v385, %v390
        %v392 = vmul.f32 %v391, 1.442695
        %v393 = vpow.pop %v392
        %v394 = vsel %vm387, %v393, 0.0
        %395 = vadd.xlane.f32.xlu0 %v394
        %v396 = vpop.xlane.xlu0 %395
        %v397 = vrcp.pop %v396
        %v398 = vmul.f32 %v393, %v397
        %v399 = vlog2.pop %v396
        %v400 = vmul.f32 %v399, 0.6931472
        %v401 = vsub.f32 %v391, %v400
        %v403 = vsel %vm387, %v398, 0
        %405 = vmatpush.msra.mxu0 0.0
        %406 = vmatpush.msra.mxu0 0.0
        %407 = vmatpush.msra.mxu0 0.0
        %408 = vmatpush.msra.mxu0 0.0
        %409 = vmatpush.msra.mxu0 0.0
        %410 = vmatpush.msra.mxu0 0.0
        %411 = vmatpush.msra.mxu0 0.0
        %412 = vmatpush.msra.mxu0 0.0
        %413 = vmatpush.msra.mxu0 0.0
        %414 = vmatpush.msra.mxu0 0.0
        %415 = vmatpush.msra.mxu0 0.0
        %416 = vmatpush.msra.mxu0 0.0
        %417 = vmatpush.msra.mxu0 0.0
        %418 = vmatpush.msra.mxu0 0.0
        %419 = vmatpush.msra.mxu0 0.0
        %420 = vmatpush.msra.mxu0 %v359
        %421 = vmatmul.f32.gmra.mxu0 %v403
        %v422 = vpop.f32.mrf.mxu0
        %v423 = vadd.f32 0.0, %v422
        %424 = vdwg.mxu0
        %425 = vst.msk [vmem:[%s341] sm:$0xff] %vm360, %v423
        %426 = vst.msk [vmem:[%s348] sm:$0xff] %vm387, %v398
        %427 = vst.msk [vmem:[%s355] sm:$0xff] %vm387, %v401
        %s428 = sand.u32 %s131, 1
        %s429 = scalar_lea.sflag [#allocation4], %s428
        %s430 = sand.u32 %s131, 1
        %s431 = smul.addr %s430, 8
        %s432 = scalar_lea.vmem [#allocation8], %s431
        %s433 = sand.u32 %s29, 1
        %s434 = scalar_lea.sflag [#allocation10], %s433
        %s435 = sand.u32 %s159, 1
        %s436 = smul.addr %s435, 8
        %s437 = scalar_lea.vmem [#allocation9], %s436
        %s438 = sand.u32 %s29, 1
        %s439 = scalar_lea.sflag [#allocation10], %s438
        %s440 = sand.u32 %s187, 1
        %s441 = smul.addr %s440, 8
        %s442 = scalar_lea.vmem [#allocation11], %s441
        // Predicated region
        $region45: #{tpu_custom_call.1} parent=31 // pred_check
          %p443 = pneg %p141
        $region46: #{tpu_custom_call.1} parent=31 // pred_check_branch
          %445 = sbr.rel (%p443) target = $region48
        $region47: #{tpu_custom_call.1} parent=31 // pred_region
          %447 = vsyncadd %s429, 0
          %s448 = sadd.s32 %s34, %s33
          %s449 = smul.addr %s448, 8
          %s450 = scalar_lea.hbm %s3, %s449
          %s452 = sshll.u32 %s432, 4
          %s453 = int_to_ptr.vmem [resolvable:$true] %s452
          %s454 = sshll.u32 %s450, 4
          %s455 = int_to_ptr.hbm [resolvable:$true] %s454
          %457 = dma.vmem_to_hbm [thread:$0]  %s453, 128, %s455, %s429
        $region48: #{tpu_custom_call.1} parent=31 // pred_fallthru
          _
        // Predicated region
        $region49: #{tpu_custom_call.1} parent=31 // pred_check
          %p458 = pneg %p169
        $region50: #{tpu_custom_call.1} parent=31 // pred_check_branch
          %460 = sbr.rel (%p458) target = $region52
        $region51: #{tpu_custom_call.1} parent=31 // pred_region
          %462 = vsyncadd %s434, 0
          %s463 = sadd.s32 %s34, %s33
          %s464 = smul.addr %s463, 8
          %s465 = scalar_lea.hbm %s4, %s464
          %s467 = sshll.u32 %s437, 4
          %s468 = int_to_ptr.vmem [resolvable:$true] %s467
          %s469 = sshll.u32 %s465, 4
          %s470 = int_to_ptr.hbm [resolvable:$true] %s469
          %472 = dma.vmem_to_hbm [thread:$0]  %s468, 128, %s470, %s434
        $region52: #{tpu_custom_call.1} parent=31 // pred_fallthru
          _
        // Predicated region
        $region53: #{tpu_custom_call.1} parent=31 // pred_check
          %p473 = pneg %p197
        $region54: #{tpu_custom_call.1} parent=31 // pred_check_branch
          %475 = sbr.rel (%p473) target = $region56
        $region55: #{tpu_custom_call.1} parent=31 // pred_region
          %477 = vsyncadd %s439, 0
          %s478 = sadd.s32 %s34, %s33
          %s479 = smul.addr %s478, 8
          %s480 = scalar_lea.hbm %s5, %s479
          %s482 = sshll.u32 %s442, 4
          %s483 = int_to_ptr.vmem [resolvable:$true] %s482
          %s484 = sshll.u32 %s480, 4
          %s485 = int_to_ptr.hbm [resolvable:$true] %s484
          %487 = dma.vmem_to_hbm [thread:$0]  %s483, 128, %s485, %s439
        $region56: #{tpu_custom_call.1} parent=31 // pred_fallthru
          _
      $region32: #{tpu_custom_call.1} parent=5 // pred_fallthru
        _
      %p488 = scmp.le.s32.totalorder 2, %s24
      // Predicated region
      $region57: #{tpu_custom_call.1} parent=5 // pred_check
        %p489 = pneg %p488
      $region58: #{tpu_custom_call.1} parent=5 // pred_check_branch
        %491 = sbr.rel (%p489) target = $region60
      $region59: #{tpu_custom_call.1} parent=5 // pred_region
        %s492 = ssub.s32 %s24, 2
        // Predicated region
        $region61: #{tpu_custom_call.1} parent=59 // pred_check
          %p493 = pneg %p147
        $region62: #{tpu_custom_call.1} parent=59 // pred_check_branch
          %495 = sbr.rel (%p493) target = $region64
        $region63: #{tpu_custom_call.1} parent=59 // pred_region
          %s496 = sand.u32 %s132, 1
          %s497 = scalar_lea.sflag [#allocation4], %s496
          %s498 = sand.u32 %s132, 1
          %s499 = smul.addr %s498, 8
          %s500 = scalar_lea.vmem [#allocation8], %s499
          %502 = dma.done %s497, 128
        $region64: #{tpu_custom_call.1} parent=59 // pred_fallthru
          _
        // Predicated region
        $region65: #{tpu_custom_call.1} parent=59 // pred_check
          %p503 = pneg %p175
        $region66: #{tpu_custom_call.1} parent=59 // pred_check_branch
          %505 = sbr.rel (%p503) target = $region68
        $region67: #{tpu_custom_call.1} parent=59 // pred_region
          %s506 = sand.u32 %s30, 1
          %s507 = scalar_lea.sflag [#allocation10], %s506
          %s508 = sand.u32 %s160, 1
          %s509 = smul.addr %s508, 8
          %s510 = scalar_lea.vmem [#allocation9], %s509
          %512 = dma.done %s507, 128
        $region68: #{tpu_custom_call.1} parent=59 // pred_fallthru
          _
        // Predicated region
        $region69: #{tpu_custom_call.1} parent=59 // pred_check
          %p513 = pneg %p203
        $region70: #{tpu_custom_call.1} parent=59 // pred_check_branch
          %515 = sbr.rel (%p513) target = $region72
        $region71: #{tpu_custom_call.1} parent=59 // pred_region
          %s516 = sand.u32 %s30, 1
          %s517 = scalar_lea.sflag [#allocation10], %s516
          %s518 = sand.u32 %s188, 1
          %s519 = smul.addr %s518, 8
          %s520 = scalar_lea.vmem [#allocation11], %s519
          %522 = dma.done %s517, 128
        $region72: #{tpu_custom_call.1} parent=59 // pred_fallthru
          _
      $region60: #{tpu_custom_call.1} parent=5 // pred_fallthru
        _
    $region6: #{tpu_custom_call.1} parent=1 // loop_footer
      %s28 = sadd.s32 1, %s24
    $region7: #{tpu_custom_call.1} parent=1 // loop_footer_branch
      %23 = sbr.rel target = $region3
    $region8: #{tpu_custom_call.1} parent=1 // loop_exit
      _
    %523 = vsyncpa [#allocation3], 1
    %s524 = scalar_lea.sflag [#allocation3], 1
    %525 = vsyncpa %s524, 1
    %526 = vsyncpa [#allocation6], 1
    %s527 = scalar_lea.sflag [#allocation6], 1
    %528 = vsyncpa %s527, 1
    %529 = vsyncpa [#allocation4], 1
    %s530 = scalar_lea.sflag [#allocation4], 1
    %531 = vsyncpa %s530, 1
    %532 = vsyncpa [#allocation10], 1
    %s533 = scalar_lea.sflag [#allocation10], 1
    %534 = vsyncpa %s533, 1

</llo_original>
